<compile_context>
chip_gen: v7x
topology: tpu7x:2x2x1
jax: 0.10.0
libtpu: 0.0.40
codegen_flags: <defaults>
</compile_context>

<pallas_src>
import functools

import jax
import jax.numpy as jnp
from jax.experimental import pallas as pl
from jax.experimental.pallas import tpu as pltpu


def _triplet_kernel(a_ref, p_ref, n_ref, o_ref, *, margin, batch, row_tile):
    a = a_ref[...].astype(jnp.float32)
    p = p_ref[...].astype(jnp.float32)
    n = n_ref[...].astype(jnp.float32)

    # Fused elementwise difference of squared distances, then a single
    # lane (embedding-dim) reduction, kept 2-D to avoid relayouts.
    dp_minus_dn = (a - p) * (a - p) - (a - n) * (a - n)      # (row_tile, D)
    per_row = jnp.sum(dp_minus_dn, axis=1, keepdims=True)    # (row_tile, 1)

    hinge = jnp.maximum(per_row + margin, 0.0)               # (row_tile, 1)

    # Mask rows that are padding (global row index >= real batch size) BEFORE
    # the sum so padded rows don't contribute `margin` to the loss.
    row0 = pl.program_id(0) * row_tile
    ridx = row0 + jax.lax.broadcasted_iota(jnp.int32, (row_tile, 1), 0)
    hinge = jnp.where(ridx < batch, hinge, 0.0)

    # One partial sum per grid step, written to this tile's own output slot.
    o_ref[...] = jnp.sum(hinge, keepdims=True)               # (1, 1)


def _choose_row_tile(batch, dim, itemsize,
                     vmem_tile_budget_bytes=32 * 1024 * 1024,
                     max_rows=1024):
    """Largest row tile whose double-buffered footprint fits the VMEM budget.

    Footprint ~= 3 inputs x 2 pipeline buffers x row_tile x dim x itemsize.
    Rounded down to a multiple of 8 (sublane granularity), capped so a tile
    is never larger than the (padded) batch, and always >= 8.
    """
    per_row_bytes = 6 * dim * itemsize
    rows = max(8, vmem_tile_budget_bytes // max(per_row_bytes, 1))
    rows = min(rows, max_rows)
    rows = (rows // 8) * 8
    batch_pad8 = ((batch + 7) // 8) * 8
    rows = min(rows, batch_pad8)
    return max(int(rows), 8)


def triplet_loss_v2(anchor, positive, negative, margin, *, row_tile=None):
    """Scalar sum of relu(||a-p||^2 - ||a-n||^2 + margin) over the batch."""
    B, D = anchor.shape
    assert positive.shape == (B, D) and negative.shape == (B, D)

    itemsize = jnp.dtype(anchor.dtype).itemsize
    if row_tile is None:
        row_tile = _choose_row_tile(B, D, itemsize)
    assert row_tile % 8 == 0 and row_tile >= 8

    # Pad the batch to a multiple of the tile; padded rows are masked in-kernel.
    B_pad = ((B + row_tile - 1) // row_tile) * row_tile
    if B_pad != B:
        pad = ((0, B_pad - B), (0, 0))
        anchor = jnp.pad(anchor, pad)
        positive = jnp.pad(positive, pad)
        negative = jnp.pad(negative, pad)
    num_tiles = B_pad // row_tile

    # Explicit VMEM budget so large tiles are not blocked by the default
    # scoped limit; stays well under v7x's 64 MiB physical VMEM.
    vmem_needed = 6 * row_tile * D * itemsize + (1 << 20)
    vmem_limit = int(min(48 << 20, max(32 << 20, vmem_needed + (4 << 20))))

    kernel = functools.partial(
        _triplet_kernel, margin=float(margin), batch=B, row_tile=row_tile)

    partials = pl.pallas_call(
        kernel,
        out_shape=jax.ShapeDtypeStruct((1, num_tiles), jnp.float32),
        grid_spec=pltpu.PrefetchScalarGridSpec(
            num_scalar_prefetch=0,
            grid=(num_tiles,),
            in_specs=[
                pl.BlockSpec((row_tile, D), lambda i: (i, 0)),
                pl.BlockSpec((row_tile, D), lambda i: (i, 0)),
                pl.BlockSpec((row_tile, D), lambda i: (i, 0)),
            ],
            out_specs=pl.BlockSpec((1, 1), lambda i: (0, i)),
        ),
        compiler_params=pltpu.CompilerParams(
            dimension_semantics=("parallel",),   # independent per-tile partials
            vmem_limit_bytes=vmem_limit,
        ),
    )(anchor, positive, negative)

    # Final (tiny) reduction over per-tile partial sums happens in JAX.
    return jnp.sum(partials)


def triplet_loss_v2_ref(anchor, positive, negative, margin):
    a = anchor.astype(jnp.float32)
    p = positive.astype(jnp.float32)
    n = negative.astype(jnp.float32)
    dp = jnp.sum((a - p) ** 2, axis=1)
    dn = jnp.sum((a - n) ** 2, axis=1)
    return jnp.sum(jnp.maximum(dp - dn + margin, 0.0))


if __name__ == "__main__":
    key = jax.random.PRNGKey(0)
    margin = 0.2

    # Case 1: ragged batch (exercises padding + in-kernel row mask).
    k_a, k_p, k_n = jax.random.split(key, 3)
    B, D = 10, 256
    anchor = jax.random.normal(k_a, (B, D), dtype=jnp.float32)
    positive = jax.random.normal(k_p, (B, D), dtype=jnp.float32)
    negative = jax.random.normal(k_n, (B, D), dtype=jnp.float32)

    loss = jax.block_until_ready(triplet_loss_v2(anchor, positive, negative, margin))
    ref = triplet_loss_v2_ref(anchor, positive, negative, margin)
    assert jnp.allclose(loss, ref, rtol=1e-5, atol=1e-5), (loss, ref)

    # Case 2: multiple tiles along the (parallel) batch grid axis.
    k_a2, k_p2, k_n2 = jax.random.split(jax.random.PRNGKey(1), 3)
    B2, D2 = 64, 128
    a2 = jax.random.normal(k_a2, (B2, D2), dtype=jnp.bfloat16)
    p2 = jax.random.normal(k_p2, (B2, D2), dtype=jnp.bfloat16)
    n2 = jax.random.normal(k_n2, (B2, D2), dtype=jnp.bfloat16)

    loss2 = jax.block_until_ready(triplet_loss_v2(a2, p2, n2, margin, row_tile=16))
    ref2 = triplet_loss_v2_ref(a2, p2, n2, margin)
    assert jnp.allclose(loss2, ref2, rtol=2e-2, atol=2e-2), (loss2, ref2)

    print("KERNEL_OK")
</pallas_src>

<mosaic_0001>
module attributes {stable_mosaic.version = 11 : i64} {
  func.func @_triplet_kernel(%arg0: i32, %arg1: memref<16x256xf32, #tpu.memory_space<vmem>>, %arg2: memref<16x256xf32, #tpu.memory_space<vmem>>, %arg3: memref<16x256xf32, #tpu.memory_space<vmem>>, %arg4: memref<1x1xf32, #tpu.memory_space<vmem>>) attributes {dimension_semantics = [#tpu.dimension_semantics<parallel>], iteration_bounds = array<i64: 1>, scalar_prefetch = 0 : i64, scratch_operands = 0 : i64, tpu.core_type = #tpu.core_type<tc>, window_params = [{transform_indices = @transform_0, window_bounds = array<i64: 16, 256>}, {transform_indices = @transform_1, window_bounds = array<i64: 16, 256>}, {transform_indices = @transform_2, window_bounds = array<i64: 16, 256>}, {transform_indices = @transform_3, window_bounds = array<i64: 1, 1>}]} {
    %c0 = arith.constant 0 : index
    %c0_0 = arith.constant 0 : index
    %0 = vector.load %arg1[%c0, %c0_0] : memref<16x256xf32, #tpu.memory_space<vmem>>, vector<16x256xf32>
    %c0_1 = arith.constant 0 : index
    %c0_2 = arith.constant 0 : index
    %1 = vector.load %arg2[%c0_1, %c0_2] : memref<16x256xf32, #tpu.memory_space<vmem>>, vector<16x256xf32>
    %c0_3 = arith.constant 0 : index
    %c0_4 = arith.constant 0 : index
    %2 = vector.load %arg3[%c0_3, %c0_4] : memref<16x256xf32, #tpu.memory_space<vmem>>, vector<16x256xf32>
    %3 = arith.subf %0, %1 : vector<16x256xf32>
    %4 = arith.subf %0, %1 : vector<16x256xf32>
    %5 = arith.mulf %3, %4 : vector<16x256xf32>
    %6 = arith.subf %0, %2 : vector<16x256xf32>
    %7 = arith.subf %0, %2 : vector<16x256xf32>
    %8 = arith.mulf %6, %7 : vector<16x256xf32>
    %9 = arith.subf %5, %8 : vector<16x256xf32>
    %cst = arith.constant dense<0.000000e+00> : vector<16xf32>
    %10 = vector.multi_reduction <add>, %9, %cst [1] : vector<16x256xf32> to vector<16xf32>
    %11 = vector.shape_cast %10 : vector<16xf32> to vector<16x1xf32>
    %cst_5 = arith.constant 2.000000e-01 : f32
    %12 = vector.broadcast %cst_5 : f32 to vector<16x1xf32>
    %13 = arith.addf %11, %12 : vector<16x1xf32>
    %cst_6 = arith.constant 0.000000e+00 : f32
    %14 = vector.broadcast %cst_6 : f32 to vector<16x1xf32>
    %15 = arith.maximumf %13, %14 : vector<16x1xf32>
    %c16_i32 = arith.constant 16 : i32
    %16 = arith.muli %arg0, %c16_i32 : i32
    %17 = tpu.iota {dimensions = array<i32: 0>} : vector<16x1xi32>
    %18 = vector.broadcast %16 : i32 to vector<16x1xi32>
    %19 = arith.addi %18, %17 : vector<16x1xi32>
    %c10_i32 = arith.constant 10 : i32
    %20 = vector.broadcast %c10_i32 : i32 to vector<16x1xi32>
    %21 = arith.cmpi slt, %19, %20 : vector<16x1xi32>
    %cst_7 = arith.constant 0.000000e+00 : f32
    %22 = vector.broadcast %cst_7 : f32 to vector<16x1xf32>
    %23 = arith.select %21, %15, %22 : vector<16x1xi1>, vector<16x1xf32>
    %24 = vector.shape_cast %23 : vector<16x1xf32> to vector<1x16x1xf32>
    %cst_8 = arith.constant dense<0.000000e+00> : vector<1xf32>
    %25 = vector.multi_reduction <add>, %24, %cst_8 [1, 2] : vector<1x16x1xf32> to vector<1xf32>
    %26 = vector.shape_cast %25 : vector<1xf32> to vector<1x1x1xf32>
    %27 = vector.extract %26[0, 0, 0] : f32 from vector<1x1x1xf32>
    %28 = vector.broadcast %27 : f32 to vector<1x1xf32>
    %c0_9 = arith.constant 0 : index
    %c0_10 = arith.constant 0 : index
    %29 = vector.load %arg4[%c0_9, %c0_10] : memref<1x1xf32, #tpu.memory_space<vmem>>, vector<1x1xf32>
    tpu.vector_store %arg4[%c0_9, %c0_10], %28 {strides = array<i32>} : memref<1x1xf32, #tpu.memory_space<vmem>>, vector<1x1xf32>,
    return
  }
  func.func @transform_0(%arg0: i32) -> (i32, i32) {
    %c0_i32 = arith.constant 0 : i32
    %c0_i32_0 = arith.constant 0 : i32
    return %arg0, %c0_i32 : i32, i32
  }
  func.func @transform_1(%arg0: i32) -> (i32, i32) {
    %c0_i32 = arith.constant 0 : i32
    %c0_i32_0 = arith.constant 0 : i32
    return %arg0, %c0_i32 : i32, i32
  }
  func.func @transform_2(%arg0: i32) -> (i32, i32) {
    %c0_i32 = arith.constant 0 : i32
    %c0_i32_0 = arith.constant 0 : i32
    return %arg0, %c0_i32 : i32, i32
  }
  func.func @transform_3(%arg0: i32) -> (i32, i32) {
    %c0_i32 = arith.constant 0 : i32
    %c0_i32_0 = arith.constant 0 : i32
    return %c0_i32, %arg0 : i32, i32
  }
}

</mosaic_0001>

<llo_original>
// kernel: tpu_custom_call.1
$region0: #{tpu_custom_call.1}
  #allocation0 [shape = 'u32[]', space=smem, size = 0x4, offset = 0x4, fixed_abs, tag = 'smem constant byte address 0x4 - core index']
  #allocation1 [shape = 'u32[144,128]{1,0:T(1,128)}', space=vmem, size = 0x12000, scoped, tag = 'internal scratch']
  %s0 = inlined_call_operand.hbm [shape: f32[16,256], index: 0, kind: input, shape index: {}]
  %s1 = inlined_call_operand.hbm [shape: f32[16,256], index: 1, kind: input, shape index: {}]
  %s2 = inlined_call_operand.hbm [shape: f32[16,256], index: 2, kind: input, shape index: {}]
  %s3 = inlined_call_operand.hbm [shape: f32[1,1], index: 3, kind: output, shape index: {}]
  %s4 = sld [smem:[#allocation0]]
  $region34: #{tpu_custom_call.1} parent=0
    _
  %s6 = ssub.s32 1, %s4
  %s7 = scalar_select 0, %s6, %s4
  $region1: #{tpu_custom_call.1} parent=0
    #allocation2 [shape = 'u8[16384]{0}', space=vmem, size = 0x4000, scoped, tag = 'input window, operand 0, single buffered']
    #allocation3 [shape = 's32[1]{0}', space=sflag, size = 0x4, scoped, tag = 'scoped memory for tpu_custom_call.1']
    #allocation4 [shape = 's32[1]{0}', space=sflag, size = 0x4, scoped, tag = 'scoped memory for tpu_custom_call.1']
    #allocation5 [shape = 'u8[16384]{0}', space=vmem, size = 0x4000, scoped, tag = 'input window, operand 1, single buffered']
    #allocation6 [shape = 's32[1]{0}', space=sflag, size = 0x4, scoped, tag = 'scoped memory for tpu_custom_call.1']
    #allocation7 [shape = 'u8[16384]{0}', space=vmem, size = 0x4000, scoped, tag = 'input window, operand 2, single buffered']
    #allocation8 [shape = 'u8[512]{0}', space=vmem, size = 0x400, scoped, tag = 'output window, operand 0, single buffered']
    %8 = vsyncpa [#allocation3], 0
    %9 = vsyncpa [#allocation6], 0
    %10 = vsyncpa [#allocation4], 0
    // Predicated region
    $region2: #{tpu_custom_call.1} parent=1 // pred_check
      _
    $region3: #{tpu_custom_call.1} parent=1 // pred_check_branch
      %12 = sbr.rel (0) target = $region5
    $region4: #{tpu_custom_call.1} parent=1 // pred_region
      %s14 = ssub.s32 512, 512
      %15 = vsyncadd [#allocation3], %s14
      %s16 = sshll.u32 [#allocation2], 4
      %s17 = int_to_ptr.vmem [resolvable:$true] %s16
      %22 = dma.hbm_to_vmem [thread:$0]  %s0, 512, %s17, [#allocation3], 256, 256, 16
    $region5: #{tpu_custom_call.1} parent=1 // pred_fallthru
      _
    // Predicated region
    $region6: #{tpu_custom_call.1} parent=1 // pred_check
      _
    $region7: #{tpu_custom_call.1} parent=1 // pred_check_branch
      %24 = sbr.rel (0) target = $region9
    $region8: #{tpu_custom_call.1} parent=1 // pred_region
      %s26 = ssub.s32 512, 512
      %27 = vsyncadd [#allocation6], %s26
      %s28 = sshll.u32 [#allocation5], 4
      %s29 = int_to_ptr.vmem [resolvable:$true] %s28
      %34 = dma.hbm_to_vmem [thread:$0]  %s1, 512, %s29, [#allocation6], 256, 256, 16
    $region9: #{tpu_custom_call.1} parent=1 // pred_fallthru
      _
    // Predicated region
    $region10: #{tpu_custom_call.1} parent=1 // pred_check
      _
    $region11: #{tpu_custom_call.1} parent=1 // pred_check_branch
      %36 = sbr.rel (0) target = $region13
    $region12: #{tpu_custom_call.1} parent=1 // pred_region
      %s38 = ssub.s32 512, 512
      %39 = vsyncadd [#allocation6], %s38
      %s40 = sshll.u32 [#allocation7], 4
      %s41 = int_to_ptr.vmem [resolvable:$true] %s40
      %46 = dma.hbm_to_vmem [thread:$0]  %s2, 512, %s41, [#allocation6], 256, 256, 16
    $region13: #{tpu_custom_call.1} parent=1 // pred_fallthru
      _
    // Predicated region
    $region14: #{tpu_custom_call.1} parent=1 // pred_check
      _
    $region15: #{tpu_custom_call.1} parent=1 // pred_check_branch
      %48 = sbr.rel (0) target = $region17
    $region16: #{tpu_custom_call.1} parent=1 // pred_region
      %49 = dma.done [#allocation3], 512
    $region17: #{tpu_custom_call.1} parent=1 // pred_fallthru
      _
    // Predicated region
    $region18: #{tpu_custom_call.1} parent=1 // pred_check
      _
    $region19: #{tpu_custom_call.1} parent=1 // pred_check_branch
      %51 = sbr.rel (0) target = $region21
    $region20: #{tpu_custom_call.1} parent=1 // pred_region
      %52 = dma.done [#allocation6], 512
    $region21: #{tpu_custom_call.1} parent=1 // pred_fallthru
      _
    // Predicated region
    $region22: #{tpu_custom_call.1} parent=1 // pred_check
      _
    $region23: #{tpu_custom_call.1} parent=1 // pred_check_branch
      %54 = sbr.rel (0) target = $region25
    $region24: #{tpu_custom_call.1} parent=1 // pred_region
      %55 = dma.done [#allocation6], 512
    $region25: #{tpu_custom_call.1} parent=1 // pred_fallthru
      _
    %v56 = vld [vmem:[#allocation2] sm:$0xff]
    %v57 = vld [vmem:[#allocation2 + $0x8] sm:$0xff]
    %v58 = vld [vmem:[#allocation2 + $0x10] sm:$0xff]
    %v59 = vld [vmem:[#allocation2 + $0x18] sm:$0xff]
    %v60 = vld [vmem:[#allocation5] sm:$0xff]
    %v61 = vld [vmem:[#allocation5 + $0x8] sm:$0xff]
    %v62 = vld [vmem:[#allocation5 + $0x10] sm:$0xff]
    %v63 = vld [vmem:[#allocation5 + $0x18] sm:$0xff]
    %v64 = vld [vmem:[#allocation7] sm:$0xff]
    %v65 = vld [vmem:[#allocation7 + $0x8] sm:$0xff]
    %v66 = vld [vmem:[#allocation7 + $0x10] sm:$0xff]
    %v67 = vld [vmem:[#allocation7 + $0x18] sm:$0xff]
    %v68 = vsub.f32 %v56, %v60
    %v69 = vsub.f32 %v57, %v61
    %v70 = vsub.f32 %v58, %v62
    %v71 = vsub.f32 %v59, %v63
    %v72 = vmul.f32 %v68, %v68
    %v73 = vmul.f32 %v69, %v69
    %v74 = vmul.f32 %v70, %v70
    %v75 = vmul.f32 %v71, %v71
    %v76 = vsub.f32 %v56, %v64
    %v77 = vsub.f32 %v57, %v65
    %v78 = vsub.f32 %v58, %v66
    %v79 = vsub.f32 %v59, %v67
    %v80 = vmul.f32 %v76, %v76
    %v81 = vmul.f32 %v77, %v77
    %v82 = vmul.f32 %v78, %v78
    %v83 = vmul.f32 %v79, %v79
    %v84 = vsub.f32 %v72, %v80
    %v85 = vsub.f32 %v73, %v81
    %v86 = vsub.f32 %v74, %v82
    %v87 = vsub.f32 %v75, %v83
    %v88 = vadd.f32 %v84, %v85
    %89 = vadd.xlane.f32.xlu0 %v88
    %v90 = vpop.xlane.xlu0 %89
    %v91 = vadd.f32 %v86, %v87
    %92 = vadd.xlane.f32.xlu0 %v91
    %v93 = vpop.xlane.xlu0 %92
    %v94 = vadd.f32 %v90, 0.2
    %v95 = vadd.f32 %v93, 0.2
    %v96 = vmax.f32 %v94, 0.0
    %v97 = vmax.f32 %v95, 0.0
    %s98 = smul.u32 0, 16
    %v99 = vlaneseq
    %v100 = vshrl.u32 %v99, 7
    %v101 = vadd.s32 %v100, 8
    %v102 = vstv %s98
    %v103 = vadd.s32 %v102, %v100
    %v104 = vadd.s32 %v102, %v101
    %vm105 = vcmp.lt.s32.totalorder %v103, 10
    %vm106 = vcmp.lt.s32.totalorder %v104, 10
    %v107 = vsel %vm105, %v96, 0.0
    %v108 = vsel %vm106, %v97, 0.0
    %vm109 = vcmask 7168
    %v110 = vsel %vm109, %v107, 0.0
    %v111 = vsel %vm109, %v108, 0.0
    %v112 = vadd.f32 %v110, %v111
    %113 = vadd.xlane.f32.xlu0 %v112
    %v114 = vpop.xlane.xlu0 %113
    %v115 = vrot.slane %v114, 4
    %v116 = vadd.f32 %v114, %v115
    %v117 = vrot.slane %v116, 2
    %v118 = vadd.f32 %v116, %v117
    %v119 = vrot.slane %v118, 1
    %v120 = vadd.f32 %v118, %v119
    %s121 = vtos %v120
    %v122 = vstv %s121
    %vm123 = vcmask 0
    %124 = vst.msk [vmem:[#allocation8] sm:$0x1] %vm123, %v122
    // Predicated region
    $region26: #{tpu_custom_call.1} parent=1 // pred_check
      _
    $region27: #{tpu_custom_call.1} parent=1 // pred_check_branch
      %126 = sbr.rel (0) target = $region29
    $region28: #{tpu_custom_call.1} parent=1 // pred_region
      %s128 = ssub.s32 16, 16
      %129 = vsyncadd [#allocation4], %s128
      %s131 = sshll.u32 [#allocation8], 4
      %s132 = int_to_ptr.vmem [resolvable:$true] %s131
      %134 = dma.vmem_to_hbm [thread:$0]  %s132, 16, %s3, [#allocation4]
    $region29: #{tpu_custom_call.1} parent=1 // pred_fallthru
      _
    // Predicated region
    $region30: #{tpu_custom_call.1} parent=1 // pred_check
      _
    $region31: #{tpu_custom_call.1} parent=1 // pred_check_branch
      %136 = sbr.rel (0) target = $region33
    $region32: #{tpu_custom_call.1} parent=1 // pred_region
      %137 = dma.done [#allocation4], 16
    $region33: #{tpu_custom_call.1} parent=1 // pred_fallthru
      _
    %138 = vsyncpa [#allocation3], 1
    %139 = vsyncpa [#allocation6], 1
    %140 = vsyncpa [#allocation4], 1

</llo_original>
